<compile_context>
chip_gen: v7x
topology: tpu7x:2x2x1
jax: 0.10.0
libtpu: 0.0.40
codegen_flags: <defaults>
</compile_context>

<pallas_src>
import functools

import jax
import jax.numpy as jnp
from jax.experimental import pallas as pl
from jax.experimental.pallas import tpu as pltpu


# ----------------------------------------------------------------------------
# Pallas kernel: one (batch, output-row-tile) step.
# ----------------------------------------------------------------------------
def _cconvT_phase_kernel(xp_ref, w_ref, b_ref, o_ref, *, offs, Qw, off0,
                         row_tile):
    # xp_ref: (1, Hp, Wp, Ci)       original-resolution padded input, Ci = 2*Cin
    # w_ref : (E, E, Ci, Cp)        phase-expanded complex-combined weights,
    #                               Cp = pad128(s*s*2*Cout)
    # b_ref : (1, Cp)               phase-expanded complex-combined bias (f32)
    # o_ref : (1, row_tile*Qw, Cp)  output tile, rows = (q_h within tile, q_w)
    # offs  : static tuple of (jh, jw) offsets whose weight slice is nonzero
    Ci = xp_ref.shape[3]
    Cp = w_ref.shape[3]

    t = pl.program_id(1)                          # output-row-tile index
    row0 = pl.multiple_of(t * row_tile, row_tile)

    acc = jnp.zeros((row_tile * Qw, Cp), jnp.float32)
    for (jh, jw) in offs:                         # static, unrolled phase taps
        patch = xp_ref[0,
                       pl.ds(row0 + jh + off0, row_tile),
                       pl.ds(jw + off0, Qw),
                       :]                         # (row_tile, Qw, Ci)
        acc = acc + jnp.dot(patch.reshape(row_tile * Qw, Ci),
                            w_ref[jh, jw],
                            preferred_element_type=jnp.float32)
    acc = acc + b_ref[...]                        # f32 epilogue (v5e-safe)
    o_ref[0] = acc.astype(o_ref.dtype)


# ----------------------------------------------------------------------------
# Phase-decomposition bookkeeping (all static Python ints).
# ----------------------------------------------------------------------------
def _phase_taps(K, s, d, pad_lo):
    """Valid (phase r, kernel tap k, input offset e) triples for one dim."""
    taps = []
    for r in range(s):
        for k in range(K):
            v = r + k * d - pad_lo
            if v % s == 0:
                taps.append((r, k, v // s))
    return taps


# ----------------------------------------------------------------------------
# Wrapper: PyTorch-layout in/out, phase-expanded weights, pallas_call.
# ----------------------------------------------------------------------------
def complex_conv_transpose2d(x, w_re, b_re, w_im, b_im, *, stride=1, padding=0,
                             output_padding=0, dilation=1,
                             compute_dtype=jnp.float32, row_tile=8):
    """x: (N, Cin, H, W, 2) float32 ; torch-layout weights (Cin, Cout, K, K)."""
    N, Cin, H, W, _ = x.shape
    Cin_w, Cout, K, Kw = w_re.shape
    assert Cin_w == Cin and K == Kw
    s, p, op, d = stride, padding, output_padding, dilation
    pad_lo = d * (K - 1) - p
    assert pad_lo >= 0  # TODO(synk): padding > dilation*(K-1) needs output cropping

    Ho = (H - 1) * s - 2 * p + d * (K - 1) + op + 1
    Wo = (W - 1) * s - 2 * p + d * (K - 1) + op + 1
    Ci, Co = 2 * Cin, 2 * Cout

    # --- complex-combined, spatially-flipped, HWIO weights ---
    def flip_t(w):  # (Cin, Cout, K, K) -> (K, K, Cin, Cout)
        return jnp.transpose(jnp.flip(w, axis=(2, 3)), (2, 3, 0, 1))
    wre, wim = flip_t(w_re), flip_t(w_im)
    w_comb = jnp.concatenate(
        [jnp.concatenate([wre, wim], axis=3),      # input real channels
         jnp.concatenate([-wim, wre], axis=3)],    # input imag channels
        axis=2)                                    # (K, K, Ci, Co)
    b_comb = jnp.concatenate([b_re - b_im, b_re + b_im])  # (Co,)

    # --- sub-pixel phase decomposition (static) ---
    taps = _phase_taps(K, s, d, pad_lo)
    e_min = min(e for _, _, e in taps)
    e_max = max(e for _, _, e in taps)
    E = e_max - e_min + 1
    off0 = max(e_min, 0)               # 0 whenever pad_lo >= 0
    pad_before = max(0, -e_min)

    # static list of offsets (relative to w index space) that carry weight
    active_j = sorted({e - e_min for _, _, e in taps})
    offs = tuple((jh, jw) for jh in active_j for jw in active_j)

    Qh = -(-Ho // s)                   # phase-domain output rows
    Qw = -(-Wo // s)                   # phase-domain output cols
    TQ = row_tile if Qh > row_tile else Qh
    assert TQ == Qh or TQ % 8 == 0
    Qh_pad = -(-Qh // TQ) * TQ
    pad_after_h = max(0, Qh_pad + e_max - H)
    pad_after_w = max(0, Qw + e_max - W)

    Cp = s * s * Co                    # phase-expanded output channels
    Cp_pad = -(-Cp // 128) * 128       # lane-dense output stores (unmasked vst)
    wphase = jnp.zeros((E, E, Ci, Cp), w_comb.dtype)
    for (rh, kh, eh) in taps:          # <= K*K small static updates
        for (rw, kw, ew) in taps:
            ph = rh * s + rw
            wphase = wphase.at[eh - e_min, ew - e_min, :,
                               ph * Co:(ph + 1) * Co].set(w_comb[kh, kw])
    wphase = jnp.pad(wphase, ((0, 0), (0, 0), (0, 0), (0, Cp_pad - Cp)))
    bphase = jnp.pad(jnp.tile(b_comb, s * s),
                     (0, Cp_pad - Cp))[None, :].astype(jnp.float32)  # (1, Cp_pad)

    # --- activations: NCHW+complex -> NHWC with [re || im] channels + halo pad ---
    xr = jnp.transpose(x[..., 0], (0, 2, 3, 1))
    xi = jnp.transpose(x[..., 1], (0, 2, 3, 1))
    xc = jnp.concatenate([xr, xi], axis=-1)                      # (N, H, W, Ci)
    xp = jnp.pad(xc, ((0, 0), (pad_before, pad_after_h),
                      (pad_before, pad_after_w), (0, 0)))
    xp = xp.astype(compute_dtype)
    wphase = wphase.astype(compute_dtype)

    Hp, Wp = xp.shape[1], xp.shape[2]
    T = Qh_pad // TQ

    out = pl.pallas_call(
        functools.partial(_cconvT_phase_kernel, offs=offs, Qw=Qw, off0=off0,
                          row_tile=TQ),
        out_shape=jax.ShapeDtypeStruct((N, Qh_pad * Qw, Cp_pad), jnp.float32),
        grid_spec=pltpu.PrefetchScalarGridSpec(
            num_scalar_prefetch=0,
            grid=(N, T),
            in_specs=[
                # full padded image per batch element; same block index across
                # t => fetched once, revisited by every row tile.
                pl.BlockSpec((1, Hp, Wp, Ci), lambda n, t: (n, 0, 0, 0)),
                pl.BlockSpec((E, E, Ci, Cp_pad), lambda n, t: (0, 0, 0, 0)),
                pl.BlockSpec((1, Cp_pad), lambda n, t: (0, 0)),
            ],
            out_specs=pl.BlockSpec((1, TQ * Qw, Cp_pad), lambda n, t: (n, t, 0)),
        ),
        compiler_params=pltpu.CompilerParams(
            dimension_semantics=("parallel", "parallel"),
            vmem_limit_bytes=32 * 1024 * 1024,
        ),
    )(xp, wphase, bphase)

    # --- phase interleave (depth-to-space) + crop, back to torch layout ---
    o = out[:, :, :Cp].reshape(N, Qh_pad, Qw, s, s, Co)[:, :Qh]
    o = o.transpose(0, 1, 3, 2, 4, 5).reshape(N, Qh * s, Qw * s, Co)
    o = o[:, :Ho, :Wo, :]
    real = jnp.transpose(o[..., :Cout], (0, 3, 1, 2))
    imag = jnp.transpose(o[..., Cout:], (0, 3, 1, 2))
    return jnp.stack([real, imag], axis=-1)


# ----------------------------------------------------------------------------
# Pure-JAX reference (transposed conv via lax.conv_general_dilated).
# ----------------------------------------------------------------------------
def _ref_forward(x, w_re, b_re, w_im, b_im, *, stride, padding, output_padding,
                 dilation):
    s, p, op, d = stride, padding, output_padding, dilation
    K = w_re.shape[2]
    pad_lo = d * (K - 1) - p
    pad_hi = pad_lo + op

    def tconv(inp, w, b):
        w_oihw = jnp.transpose(jnp.flip(w, axis=(2, 3)), (1, 0, 2, 3))
        out = jax.lax.conv_general_dilated(
            inp, w_oihw, window_strides=(1, 1),
            padding=[(pad_lo, pad_hi), (pad_lo, pad_hi)],
            lhs_dilation=(s, s), rhs_dilation=(d, d),
            dimension_numbers=('NCHW', 'OIHW', 'NCHW'))
        return out + b[None, :, None, None]

    xr, xi = x[..., 0], x[..., 1]
    real = tconv(xr, w_re, b_re) - tconv(xi, w_im, b_im)
    imag = tconv(xi, w_re, b_re) + tconv(xr, w_im, b_im)
    return jnp.stack([real, imag], axis=-1)


if __name__ == "__main__":
    key = jax.random.PRNGKey(0)
    k1, k2, k3, k4, k5 = jax.random.split(key, 5)

    # small shapes consistent with the module (typical UNet decoder upsample)
    N, Cin, Cout, H, W, K = 2, 4, 4, 16, 16, 3
    stride, padding, output_padding, dilation = 2, 1, 1, 1

    x = jax.random.normal(k1, (N, Cin, H, W, 2), jnp.float32)
    bound = 1.0 / (Cout * K * K) ** 0.5
    w_re = jax.random.uniform(k2, (Cin, Cout, K, K), jnp.float32, -bound, bound)
    w_im = jax.random.uniform(k3, (Cin, Cout, K, K), jnp.float32, -bound, bound)
    b_re = jax.random.uniform(k4, (Cout,), jnp.float32, -bound, bound)
    b_im = jax.random.uniform(k5, (Cout,), jnp.float32, -bound, bound)

    ref = _ref_forward(
        x, w_re, b_re, w_im, b_im,
        stride=stride, padding=padding,
        output_padding=output_padding, dilation=dilation)

    # f32 path (exact vs reference)
    out = complex_conv_transpose2d(
        x, w_re, b_re, w_im, b_im,
        stride=stride, padding=padding,
        output_padding=output_padding, dilation=dilation,
        compute_dtype=jnp.float32)
    out = jax.block_until_ready(out)
    assert out.shape == ref.shape == (N, Cout, 32, 32, 2), (out.shape, ref.shape)
    assert jnp.allclose(out, ref, atol=1e-4, rtol=1e-4), \
        float(jnp.max(jnp.abs(out - ref)))

    # bf16 operand path (f32 accumulation) — looser tolerance
    out_bf16 = complex_conv_transpose2d(
        x, w_re, b_re, w_im, b_im,
        stride=stride, padding=padding,
        output_padding=output_padding, dilation=dilation,
        compute_dtype=jnp.bfloat16)
    out_bf16 = jax.block_until_ready(out_bf16)
    assert jnp.allclose(out_bf16, ref, atol=5e-2, rtol=5e-2), \
        float(jnp.max(jnp.abs(out_bf16 - ref)))

    print("KERNEL_OK")
</pallas_src>

<mosaic_0001>
module attributes {stable_mosaic.version = 11 : i64} {
  func.func @_cconvT_phase_kernel(%arg0: i32, %arg1: i32, %arg2: memref<1x17x17x8xf32, #tpu.memory_space<vmem>>, %arg3: memref<2x2x8x128xf32, #tpu.memory_space<vmem>>, %arg4: memref<1x128xf32, #tpu.memory_space<vmem>>, %arg5: memref<1x128x128xf32, #tpu.memory_space<vmem>>) attributes {dimension_semantics = [#tpu.dimension_semantics<parallel>, #tpu.dimension_semantics<parallel>], iteration_bounds = array<i64: 2, 2>, scalar_prefetch = 0 : i64, scratch_operands = 0 : i64, tpu.core_type = #tpu.core_type<tc>, window_params = [{transform_indices = @transform_0, window_bounds = array<i64: 1, 17, 17, 8>}, {pipeline_mode = #tpu.pipeline_mode<synchronous>, transform_indices = @transform_1, window_bounds = array<i64: 2, 2, 8, 128>}, {pipeline_mode = #tpu.pipeline_mode<synchronous>, transform_indices = @transform_2, window_bounds = array<i64: 1, 128>}, {transform_indices = @transform_3, window_bounds = array<i64: 1, 128, 128>}]} {
    %c8_i32 = arith.constant 8 : i32
    %0 = arith.muli %arg1, %c8_i32 : i32
    %1 = tpu.assume_multiple %0, 8 : i32
    %cst = arith.constant 0.000000e+00 : f32
    %2 = vector.broadcast %cst : f32 to vector<128x128xf32>
    %c0_i32 = arith.constant 0 : i32
    %3 = arith.addi %1, %c0_i32 : i32
    %c0_i32_0 = arith.constant 0 : i32
    %4 = arith.addi %3, %c0_i32_0 : i32
    %c0 = arith.constant 0 : index
    %5 = arith.index_cast %4 : i32 to index
    %c0_1 = arith.constant 0 : index
    %c0_2 = arith.constant 0 : index
    %6 = vector.load %arg2[%c0, %5, %c0_1, %c0_2] : memref<1x17x17x8xf32, #tpu.memory_space<vmem>>, vector<1x8x16x8xf32>
    %7 = vector.shape_cast %6 : vector<1x8x16x8xf32> to vector<8x16x8xf32>
    %8 = vector.shape_cast %7 : vector<8x16x8xf32> to vector<128x8xf32>
    %c0_3 = arith.constant 0 : index
    %c0_4 = arith.constant 0 : index
    %c0_5 = arith.constant 0 : index
    %c0_6 = arith.constant 0 : index
    %9 = vector.load %arg3[%c0_3, %c0_4, %c0_5, %c0_6] : memref<2x2x8x128xf32, #tpu.memory_space<vmem>>, vector<1x1x8x128xf32>
    %10 = vector.shape_cast %9 : vector<1x1x8x128xf32> to vector<8x128xf32>
    %cst_7 = arith.constant dense<0.000000e+00> : vector<128x128xf32>
    %11 = tpu.matmul %8, %10, %cst_7 {dimension_numbers = #tpu.dot_dimension_numbers<[1], [0], [0], [1], [0, 0, 1, 1], [], []>} : vector<128x8xf32>, vector<8x128xf32>, vector<128x128xf32> -> vector<128x128xf32>
    %12 = arith.addf %2, %11 : vector<128x128xf32>
    %c0_i32_8 = arith.constant 0 : i32
    %13 = arith.addi %1, %c0_i32_8 : i32
    %c0_i32_9 = arith.constant 0 : i32
    %14 = arith.addi %13, %c0_i32_9 : i32
    %c0_10 = arith.constant 0 : index
    %15 = arith.index_cast %14 : i32 to index
    %c1 = arith.constant 1 : index
    %c0_11 = arith.constant 0 : index
    %16 = vector.load %arg2[%c0_10, %15, %c1, %c0_11] : memref<1x17x17x8xf32, #tpu.memory_space<vmem>>, vector<1x8x16x8xf32>
    %17 = vector.shape_cast %16 : vector<1x8x16x8xf32> to vector<8x16x8xf32>
    %18 = vector.shape_cast %17 : vector<8x16x8xf32> to vector<128x8xf32>
    %c0_12 = arith.constant 0 : index
    %c1_13 = arith.constant 1 : index
    %c0_14 = arith.constant 0 : index
    %c0_15 = arith.constant 0 : index
    %19 = vector.load %arg3[%c0_12, %c1_13, %c0_14, %c0_15] : memref<2x2x8x128xf32, #tpu.memory_space<vmem>>, vector<1x1x8x128xf32>
    %20 = vector.shape_cast %19 : vector<1x1x8x128xf32> to vector<8x128xf32>
    %cst_16 = arith.constant dense<0.000000e+00> : vector<128x128xf32>
    %21 = tpu.matmul %18, %20, %cst_16 {dimension_numbers = #tpu.dot_dimension_numbers<[1], [0], [0], [1], [0, 0, 1, 1], [], []>} : vector<128x8xf32>, vector<8x128xf32>, vector<128x128xf32> -> vector<128x128xf32>
    %22 = arith.addf %12, %21 : vector<128x128xf32>
    %c1_i32 = arith.constant 1 : i32
    %23 = arith.addi %1, %c1_i32 : i32
    %c0_i32_17 = arith.constant 0 : i32
    %24 = arith.addi %23, %c0_i32_17 : i32
    %c0_18 = arith.constant 0 : index
    %25 = arith.index_cast %24 : i32 to index
    %c0_19 = arith.constant 0 : index
    %c0_20 = arith.constant 0 : index
    %26 = vector.load %arg2[%c0_18, %25, %c0_19, %c0_20] : memref<1x17x17x8xf32, #tpu.memory_space<vmem>>, vector<1x8x16x8xf32>
    %27 = vector.shape_cast %26 : vector<1x8x16x8xf32> to vector<8x16x8xf32>
    %28 = vector.shape_cast %27 : vector<8x16x8xf32> to vector<128x8xf32>
    %c1_21 = arith.constant 1 : index
    %c0_22 = arith.constant 0 : index
    %c0_23 = arith.constant 0 : index
    %c0_24 = arith.constant 0 : index
    %29 = vector.load %arg3[%c1_21, %c0_22, %c0_23, %c0_24] : memref<2x2x8x128xf32, #tpu.memory_space<vmem>>, vector<1x1x8x128xf32>
    %30 = vector.shape_cast %29 : vector<1x1x8x128xf32> to vector<8x128xf32>
    %cst_25 = arith.constant dense<0.000000e+00> : vector<128x128xf32>
    %31 = tpu.matmul %28, %30, %cst_25 {dimension_numbers = #tpu.dot_dimension_numbers<[1], [0], [0], [1], [0, 0, 1, 1], [], []>} : vector<128x8xf32>, vector<8x128xf32>, vector<128x128xf32> -> vector<128x128xf32>
    %32 = arith.addf %22, %31 : vector<128x128xf32>
    %c1_i32_26 = arith.constant 1 : i32
    %33 = arith.addi %1, %c1_i32_26 : i32
    %c0_i32_27 = arith.constant 0 : i32
    %34 = arith.addi %33, %c0_i32_27 : i32
    %c0_28 = arith.constant 0 : index
    %35 = arith.index_cast %34 : i32 to index
    %c1_29 = arith.constant 1 : index
    %c0_30 = arith.constant 0 : index
    %36 = vector.load %arg2[%c0_28, %35, %c1_29, %c0_30] : memref<1x17x17x8xf32, #tpu.memory_space<vmem>>, vector<1x8x16x8xf32>
    %37 = vector.shape_cast %36 : vector<1x8x16x8xf32> to vector<8x16x8xf32>
    %38 = vector.shape_cast %37 : vector<8x16x8xf32> to vector<128x8xf32>
    %c1_31 = arith.constant 1 : index
    %c1_32 = arith.constant 1 : index
    %c0_33 = arith.constant 0 : index
    %c0_34 = arith.constant 0 : index
    %39 = vector.load %arg3[%c1_31, %c1_32, %c0_33, %c0_34] : memref<2x2x8x128xf32, #tpu.memory_space<vmem>>, vector<1x1x8x128xf32>
    %40 = vector.shape_cast %39 : vector<1x1x8x128xf32> to vector<8x128xf32>
    %cst_35 = arith.constant dense<0.000000e+00> : vector<128x128xf32>
    %41 = tpu.matmul %38, %40, %cst_35 {dimension_numbers = #tpu.dot_dimension_numbers<[1], [0], [0], [1], [0, 0, 1, 1], [], []>} : vector<128x8xf32>, vector<8x128xf32>, vector<128x128xf32> -> vector<128x128xf32>
    %42 = arith.addf %32, %41 : vector<128x128xf32>
    %c0_36 = arith.constant 0 : index
    %c0_37 = arith.constant 0 : index
    %43 = vector.load %arg4[%c0_36, %c0_37] : memref<1x128xf32, #tpu.memory_space<vmem>>, vector<1x128xf32>
    %44 = vector.broadcast %43 : vector<1x128xf32> to vector<128x128xf32>
    %45 = arith.addf %42, %44 : vector<128x128xf32>
    %c0_38 = arith.constant 0 : index
    %c0_39 = arith.constant 0 : index
    %c0_40 = arith.constant 0 : index
    %46 = vector.load %arg5[%c0_38, %c0_39, %c0_40] : memref<1x128x128xf32, #tpu.memory_space<vmem>>, vector<1x128x128xf32>
    %47 = vector.shape_cast %46 : vector<1x128x128xf32> to vector<128x128xf32>
    %48 = vector.shape_cast %45 : vector<128x128xf32> to vector<1x128x128xf32>
    tpu.vector_store %arg5[%c0_38, %c0_39, %c0_40], %48 {strides = array<i32>} : memref<1x128x128xf32, #tpu.memory_space<vmem>>, vector<1x128x128xf32>,
    return
  }
  func.func @transform_0(%arg0: i32, %arg1: i32) -> (i32, i32, i32, i32) {
    %c0_i32 = arith.constant 0 : i32
    %c0_i32_0 = arith.constant 0 : i32
    %c0_i32_1 = arith.constant 0 : i32
    %c0_i32_2 = arith.constant 0 : i32
    return %arg0, %c0_i32, %c0_i32_0, %c0_i32_1 : i32, i32, i32, i32
  }
  func.func @transform_1(%arg0: i32, %arg1: i32) -> (i32, i32, i32, i32) {
    %c0_i32 = arith.constant 0 : i32
    %c0_i32_0 = arith.constant 0 : i32
    %c0_i32_1 = arith.constant 0 : i32
    %c0_i32_2 = arith.constant 0 : i32
    %c0_i32_3 = arith.constant 0 : i32
    return %c0_i32, %c0_i32_0, %c0_i32_1, %c0_i32_2 : i32, i32, i32, i32
  }
  func.func @transform_2(%arg0: i32, %arg1: i32) -> (i32, i32) {
    %c0_i32 = arith.constant 0 : i32
    %c0_i32_0 = arith.constant 0 : i32
    %c0_i32_1 = arith.constant 0 : i32
    return %c0_i32, %c0_i32_0 : i32, i32
  }
  func.func @transform_3(%arg0: i32, %arg1: i32) -> (i32, i32, i32) {
    %c0_i32 = arith.constant 0 : i32
    %c0_i32_0 = arith.constant 0 : i32
    return %arg0, %arg1, %c0_i32 : i32, i32, i32
  }
}

</mosaic_0001>

<llo_original>
// kernel: tpu_custom_call.1
$region0: #{tpu_custom_call.1}
  #allocation0 [shape = 'u32[]', space=smem, size = 0x4, offset = 0x4, fixed_abs, tag = 'smem constant byte address 0x4 - core index']
  #allocation1 [shape = 'u32[144,128]{1,0:T(1,128)}', space=vmem, size = 0x12000, scoped, tag = 'internal scratch']
  %s0 = inlined_call_operand.vmem [shape: f32[2,17,17,8], index: 0, kind: input, shape index: {}]
  %s1 = inlined_call_operand.vmem [shape: f32[2,2,8,128], index: 1, kind: input, shape index: {}]
  %s2 = inlined_call_operand.vmem [shape: f32[1,128], index: 2, kind: input, shape index: {}]
  %s3 = inlined_call_operand.hbm [shape: f32[2,256,128], index: 3, kind: output, shape index: {}]
  %s4 = sld [smem:[#allocation0]]
  $region45: #{tpu_custom_call.1} parent=0
    _
  %s6 = ssub.s32 1, %s4
  %s7 = scalar_select 0, %s6, %s4
  $region1: #{tpu_custom_call.1} parent=0
    #allocation2 [shape = 'u8[131072]{0}', space=vmem, size = 0x20000, scoped, tag = 'output window, operand 0']
    #allocation3 [shape = 's32[2]{0}', space=sflag, size = 0x8, scoped, tag = 'scoped memory for tpu_custom_call.1']
    %8 = vsyncpa [#allocation3], 0
    %s9 = scalar_lea.sflag [#allocation3], 1
    %10 = vsyncpa %s9, 0
    loop: start=0, step=1, limit=6
    $region2: #{tpu_custom_call.1} parent=1 // loop_pre_header
      _
    $region3: #{tpu_custom_call.1} parent=1 // loop_header
      %s12 = sphi 0, %s16
      %p13 = scmp.ge.s32.totalorder %s12, 6
      %s19 = sphi 0, %s31
      %s20 = sphi 0, %s27
      %s21 = sphi 0, %s19
      %s22 = sphi 0, %s20
      %s23 = sphi 0, %s21
      %s24 = sphi 0, %s22
      %s34 = sphi 0, %s36
      %s37 = sphi 0, %s34
      %s38 = sphi 0, %s37
      %s54 = sphi 0, %s38
      %s58 = sphi 0, %s58
      %s60 = sphi 0, %s58
      %s61 = sphi 0, %s60
      %s75 = sphi 0, %s61
      %s79 = sphi 0, %s79
      %s81 = sphi 0, %s79
      %s82 = sphi 0, %s81
      %s96 = sphi 0, %s82
      %s104 = sphi 0, %s106
      %s107 = sphi 0, %s104
      %s108 = sphi 0, %s107
      %s124 = sphi 0, %s108
    $region4: #{tpu_custom_call.1} parent=1 // loop_header_branch
      %15 = sbr.rel (%p13) target = $region8
    $region5: #{tpu_custom_call.1} parent=1 // loop_body
      %s17 = ssub.s32 %s12, 1
      %s18 = ssub.s32 %s12, 2
      %s25 = sadd.s32 1, %s20
      %p26 = scmp.ge.s32.totalorder %s25, 2
      %s27 = scalar_select %p26, 0, %s25
      %s28 = sadd.s32 1, %s19
      %s29 = scalar_select %p26, %s28, %s19
      %p30 = scmp.ge.s32.totalorder %s29, 2
      %s31 = scalar_select %p30, 0, %s29
      %s32 = ssub.s32 %s19, %s31
      %p33 = scmp.eq.s32.totalorder %s32, 0
      %s35 = sadd.s32 %s34, 1
      %s36 = scalar_select %p33, %s34, %s35
      %p39 = pneg %p33
      %p40 = scmp.eq.s32.totalorder %s12, 3
      %p41 = por %p39, %p40
      %p42 = scmp.ne.s32.totalorder %s34, %s37
      %p43 = scmp.eq.s32.totalorder %s12, 0
      %p44 = por %p42, %p43
      %p45 = scmp.ne.s32.totalorder %s34, %s37
      %p46 = scmp.eq.s32.totalorder %s17, 3
      %p47 = por %p45, %p46
      %p48 = scmp.ne.s32.totalorder %s37, %s38
      %p49 = scmp.eq.s32.totalorder %s17, 0
      %p50 = por %p48, %p49
      %p51 = scmp.ne.s32.totalorder %s37, %s38
      %p52 = scmp.eq.s32.totalorder %s18, 3
      %p53 = por %p51, %p52
      %p55 = scmp.ne.s32.totalorder %s38, %s54
      %p56 = scmp.eq.s32.totalorder %s18, 0
      %p57 = por %p55, %p56
      %s59 = sadd.s32 %s58, 1
      %p62 = scmp.eq.s32.totalorder %s12, 3
      %p63 = scmp.ne.s32.totalorder %s58, %s60
      %p64 = scmp.eq.s32.totalorder %s12, 0
      %p65 = por %p63, %p64
      %p66 = scmp.ne.s32.totalorder %s58, %s60
      %p67 = scmp.eq.s32.totalorder %s17, 3
      %p68 = por %p66, %p67
      %p69 = scmp.ne.s32.totalorder %s60, %s61
      %p70 = scmp.eq.s32.totalorder %s17, 0
      %p71 = por %p69, %p70
      %p72 = scmp.ne.s32.totalorder %s60, %s61
      %p73 = scmp.eq.s32.totalorder %s18, 3
      %p74 = por %p72, %p73
      %p76 = scmp.ne.s32.totalorder %s61, %s75
      %p77 = scmp.eq.s32.totalorder %s18, 0
      %p78 = por %p76, %p77
      %s80 = sadd.s32 %s79, 1
      %p83 = scmp.eq.s32.totalorder %s12, 3
      %p84 = scmp.ne.s32.totalorder %s79, %s81
      %p85 = scmp.eq.s32.totalorder %s12, 0
      %p86 = por %p84, %p85
      %p87 = scmp.ne.s32.totalorder %s79, %s81
      %p88 = scmp.eq.s32.totalorder %s17, 3
      %p89 = por %p87, %p88
      %p90 = scmp.ne.s32.totalorder %s81, %s82
      %p91 = scmp.eq.s32.totalorder %s17, 0
      %p92 = por %p90, %p91
      %p93 = scmp.ne.s32.totalorder %s81, %s82
      %p94 = scmp.eq.s32.totalorder %s18, 3
      %p95 = por %p93, %p94
      %p97 = scmp.ne.s32.totalorder %s82, %s96
      %p98 = scmp.eq.s32.totalorder %s18, 0
      %p99 = por %p97, %p98
      %s100 = ssub.s32 %s19, %s31
      %s101 = ssub.s32 %s20, %s27
      %s102 = sor.u32 %s100, %s101
      %p103 = scmp.eq.s32.totalorder %s102, 0
      %s105 = sadd.s32 %s104, 1
      %s106 = scalar_select %p103, %s104, %s105
      %p109 = pneg %p103
      %p110 = scmp.eq.s32.totalorder %s12, 3
      %p111 = por %p109, %p110
      %p112 = scmp.ne.s32.totalorder %s104, %s107
      %p113 = scmp.eq.s32.totalorder %s12, 0
      %p114 = por %p112, %p113
      %p115 = scmp.ne.s32.totalorder %s104, %s107
      %p116 = scmp.eq.s32.totalorder %s17, 3
      %p117 = por %p115, %p116
      %p118 = scmp.ne.s32.totalorder %s107, %s108
      %p119 = scmp.eq.s32.totalorder %s17, 0
      %p120 = por %p118, %p119
      %p121 = scmp.ne.s32.totalorder %s107, %s108
      %p122 = scmp.eq.s32.totalorder %s18, 3
      %p123 = por %p121, %p122
      %p125 = scmp.ne.s32.totalorder %s108, %s124
      %p126 = scmp.eq.s32.totalorder %s18, 0
      %p127 = por %p125, %p126
      %p128 = scmp.le.s32.totalorder 1, %s12
      %p129 = scmp.lt.s32.totalorder %s12, 5
      %p130 = pnand %p128, %p129
      %p131 = pneg %p130
      // Predicated region
      $region9: #{tpu_custom_call.1} parent=5 // pred_check
        _
      $region10: #{tpu_custom_call.1} parent=5 // pred_check_branch
        %133 = sbr.rel (%p130) target = $region12
      $region11: #{tpu_custom_call.1} parent=5 // pred_region
        %s134 = ssub.s32 %s12, 1
        // Predicated region
        $region13: #{tpu_custom_call.1} parent=11 // pred_check
          %p135 = pneg %p71
        $region14: #{tpu_custom_call.1} parent=11 // pred_check_branch
          %137 = sbr.rel (%p135) target = $region16
        $region15: #{tpu_custom_call.1} parent=11 // pred_region
          _
        $region16: #{tpu_custom_call.1} parent=11 // pred_fallthru
          _
        // Predicated region
        $region17: #{tpu_custom_call.1} parent=11 // pred_check
          %p138 = pneg %p92
        $region18: #{tpu_custom_call.1} parent=11 // pred_check_branch
          %140 = sbr.rel (%p138) target = $region20
        $region19: #{tpu_custom_call.1} parent=11 // pred_region
          _
        $region20: #{tpu_custom_call.1} parent=11 // pred_fallthru
          _
      $region12: #{tpu_custom_call.1} parent=5 // pred_fallthru
        _
      %p141 = scmp.lt.s32.totalorder %s12, 4
      // Predicated region
      $region21: #{tpu_custom_call.1} parent=5 // pred_check
        %p142 = pneg %p141
      $region22: #{tpu_custom_call.1} parent=5 // pred_check_branch
        %144 = sbr.rel (%p142) target = $region24
      $region23: #{tpu_custom_call.1} parent=5 // pred_region
        // Predicated region
        $region25: #{tpu_custom_call.1} parent=23 // pred_check
          %p145 = pneg %p44
        $region26: #{tpu_custom_call.1} parent=23 // pred_check_branch
          %147 = sbr.rel (%p145) target = $region28
        $region27: #{tpu_custom_call.1} parent=23 // pred_region
          %p148 = scmp.lt.s32.totalorder %s19, 1
          %s149 = scalar_select %p148, %s19, 1
          %s150 = smul.addr %s149, 51
          %s151 = smul.addr %s150, 8
          %s152 = scalar_lea.vmem %s0, %s151
        $region28: #{tpu_custom_call.1} parent=23 // pred_fallthru
          _
      $region24: #{tpu_custom_call.1} parent=5 // pred_fallthru
        _
      %p153 = scmp.le.s32.totalorder 1, %s12
      %p154 = scmp.lt.s32.totalorder %s12, 5
      %p155 = pnand %p153, %p154
      %p156 = pneg %p155
      // Predicated region
      $region29: #{tpu_custom_call.1} parent=5 // pred_check
        _
      $region30: #{tpu_custom_call.1} parent=5 // pred_check_branch
        %158 = sbr.rel (%p155) target = $region32
      $region31: #{tpu_custom_call.1} parent=5 // pred_region
        %s159 = ssub.s32 %s12, 1
        %p160 = scmp.lt.s32.totalorder %s21, 1
        %s161 = scalar_select %p160, %s21, 1
        %s162 = smul.addr %s161, 51
        %s163 = smul.addr %s162, 8
        %s164 = scalar_lea.vmem %s0, %s163
        %p165 = pneg %p50
        %p166 = pneg %p47
        %p167 = pneg %p71
        %p168 = pneg %p68
        %p169 = pneg %p92
        %p170 = pneg %p89
        %p171 = pneg %p120
        %p172 = pneg %p117
        %s173 = sand.u32 %s107, 1
        %s174 = scalar_lea.sflag [#allocation3], %s173
        %s175 = sand.u32 %s107, 1
        %s176 = smul.addr %s175, 128
        %s177 = scalar_lea.vmem [#allocation2], %s176
        %p178 = scmp.lt.s32.totalorder %s21, 1
        %s179 = scalar_select %p178, %s21, 1
        %s180 = smul.addr %s179, 51
        %s181 = smul.addr %s180, 8
        %s182 = scalar_lea.vmem %s0, %s181
        %s183 = smul.u32 16, %s22
        %s184 = smul.u32 %s22, 8
        %s185 = smul.u32 %s184, 24
        %s186 = scalar_lea.vmem %s182, %s185
        %v187 = vld [vmem:[%s186] sm:$0xff]
        %v188 = vld [vmem:[%s186 + $0x8] sm:$0xff]
        %v189 = vld [vmem:[%s186 + $0x18] sm:$0xff]
        %v190 = vld [vmem:[%s186 + $0x20] sm:$0xff]
        %v191 = vld [vmem:[%s186 + $0x30] sm:$0xff]
        %v192 = vld [vmem:[%s186 + $0x38] sm:$0xff]
        %v193 = vld [vmem:[%s186 + $0x48] sm:$0xff]
        %v194 = vld [vmem:[%s186 + $0x50] sm:$0xff]
        %v195 = vld [vmem:[%s186 + $0x60] sm:$0xff]
        %v196 = vld [vmem:[%s186 + $0x68] sm:$0xff]
        %v197 = vld [vmem:[%s186 + $0x78] sm:$0xff]
        %v198 = vld [vmem:[%s186 + $0x80] sm:$0xff]
        %v199 = vld [vmem:[%s186 + $0x90] sm:$0xff]
        %v200 = vld [vmem:[%s186 + $0x98] sm:$0xff]
        %v201 = vld [vmem:[%s186 + $0xa8] sm:$0xff]
        %v202 = vld [vmem:[%s186 + $0xb0] sm:$0xff]
        %v203 = vld [vmem:[%s1] sm:$0xff]
        %v204 = vld [vmem:[%s186 + $0x1] sm:$0xff]
        %v205 = vld [vmem:[%s186 + $0x9] sm:$0xff]
        %v206 = vld [vmem:[%s186 + $0x19] sm:$0xff]
        %v207 = vld [vmem:[%s186 + $0x21] sm:$0xff]
        %v208 = vld [vmem:[%s186 + $0x31] sm:$0xff]
        %v209 = vld [vmem:[%s186 + $0x39] sm:$0xff]
        %v210 = vld [vmem:[%s186 + $0x49] sm:$0xff]
        %v211 = vld [vmem:[%s186 + $0x51] sm:$0xff]
        %v212 = vld [vmem:[%s186 + $0x61] sm:$0xff]
        %v213 = vld [vmem:[%s186 + $0x69] sm:$0xff]
        %v214 = vld [vmem:[%s186 + $0x79] sm:$0xff]
        %v215 = vld [vmem:[%s186 + $0x81] sm:$0xff]
        %v216 = vld [vmem:[%s186 + $0x91] sm:$0xff]
        %v217 = vld [vmem:[%s186 + $0x99] sm:$0xff]
        %v218 = vld [vmem:[%s186 + $0xa9] sm:$0xff]
        %v219 = vld [vmem:[%s186 + $0xb1] sm:$0xff]
        %s220 = scalar_lea.vmem %s1, 8
        %v221 = vld [vmem:[%s220] sm:$0xff]
        %vm222 = vcmask 64512
        %v224 = vsel %vm222, %v204, 0
        %v227 = vsel %vm222, %v205, 0
        %v230 = vsel %vm222, %v206, 0
        %v233 = vsel %vm222, %v207, 0
        %v236 = vsel %vm222, %v208, 0
        %v239 = vsel %vm222, %v209, 0
        %v242 = vsel %vm222, %v210, 0
        %v245 = vsel %vm222, %v211, 0
        %v248 = vsel %vm222, %v212, 0
        %v251 = vsel %vm222, %v213, 0
        %v254 = vsel %vm222, %v214, 0
        %v257 = vsel %vm222, %v215, 0
        %v260 = vsel %vm222, %v216, 0
        %v263 = vsel %vm222, %v217, 0
        %v266 = vsel %vm222, %v218, 0
        %v269 = vsel %vm222, %v219, 0
        %271 = vmatprep.subr.mxu0 0.0
        %272 = vmatpush1.msra.mxu0 %v221
        %273 = vmatprep.subr.mxu0 0.0
        %274 = vmatpush1.msra.mxu0 0.0
        %275 = vmatprep.subr.mxu0 0.0
        %276 = vmatpush1.msra.mxu0 0.0
        %277 = vmatprep.subr.mxu0 0.0
        %278 = vmatpush1.msra.mxu0 0.0
        %279 = vmatprep.subr.mxu0 0.0
        %280 = vmatpush1.msra.mxu0 0.0
        %281 = vmatprep.subr.mxu0 0.0
        %282 = vmatpush1.msra.mxu0 0.0
        %283 = vmatprep.subr.mxu0 0.0
        %284 = vmatpush1.msra.mxu0 0.0
        %285 = vmatprep.subr.mxu0 0.0
        %286 = vmatpush1.msra.mxu0 0.0
        %287 = vmatprep.subr.mxu0 0.0
        %288 = vmatpush1.msra.mxu0 0.0
        %289 = vmatprep.subr.mxu0 0.0
        %290 = vmatpush1.msra.mxu0 0.0
        %291 = vmatprep.subr.mxu0 0.0
        %292 = vmatpush1.msra.mxu0 0.0
        %293 = vmatprep.subr.mxu0 0.0
        %294 = vmatpush1.msra.mxu0 0.0
        %295 = vmatprep.subr.mxu0 0.0
        %296 = vmatpush1.msra.mxu0 0.0
        %297 = vmatprep.subr.mxu0 0.0
        %298 = vmatpush1.msra.mxu0 0.0
        %299 = vmatprep.subr.mxu0 0.0
        %300 = vmatpush1.msra.mxu0 0.0
        %301 = vmatprep.subr.mxu0 0.0
        %302 = vmatpush1.msra.mxu0 0.0
        %303 = vmatprep.subr.mxu0 0.0
        %304 = vmatpush1.msra.mxu0 0.0
        %305 = vmatprep.subr.mxu0 0.0
        %306 = vmatpush1.msra.mxu0 0.0
        %307 = vmatprep.subr.mxu0 0.0
        %308 = vmatpush1.msra.mxu0 0.0
        %309 = vmatprep.subr.mxu0 0.0
        %310 = vmatpush1.msra.mxu0 0.0
        %311 = vmatprep.subr.mxu0 0.0
        %312 = vmatpush1.msra.mxu0 0.0
        %313 = vmatprep.subr.mxu0 0.0
        %314 = vmatpush1.msra.mxu0 0.0
        %315 = vmatprep.subr.mxu0 0.0
        %316 = vmatpush1.msra.mxu0 0.0
        %317 = vmatprep.subr.mxu0 0.0
        %318 = vmatpush1.msra.mxu0 0.0
        %319 = vmatprep.subr.mxu0 0.0
        %320 = vmatpush1.msra.mxu0 0.0
        %321 = vmatprep.subr.mxu0 0.0
        %322 = vmatpush1.msra.mxu0 0.0
        %323 = vmatprep.subr.mxu0 0.0
        %324 = vmatpush1.msra.mxu0 0.0
        %325 = vmatprep.subr.mxu0 0.0
        %326 = vmatpush1.msra.mxu0 0.0
        %327 = vmatprep.subr.mxu0 0.0
        %328 = vmatpush1.msra.mxu0 0.0
        %329 = vmatprep.subr.mxu0 0.0
        %330 = vmatpush1.msra.mxu0 0.0
        %331 = vmatprep.subr.mxu0 0.0
        %332 = vmatpush1.msra.mxu0 0.0
        %333 = vmatprep.subr.mxu0 0.0
        %334 = vmatpush1.msra.mxu0 0.0
        %335 = vmatprep.mubr.f32.mxu0 0.0
        %336 = vmatmul.mubr.f32.gmra.mrb[0].mxu0 %v224
        %v337 = vpop.f32.mrb[0].mxu0
        %v338 = vadd.f32 0.0, %v337
        %v339 = vpop.f32.mrb[0].mxu0
        %340 = vmatprep.mubr.f32.mxu0 0.0
        %341 = vmatmul.mubr.f32.gmra.mrb[0].mxu0 %v227
        %v342 = vpop.f32.mrb[0].mxu0
        %v343 = vadd.f32 0.0, %v342
        %v344 = vpop.f32.mrb[0].mxu0
        %345 = vmatprep.mubr.f32.mxu0 0.0
        %346 = vmatmul.mubr.f32.gmra.mrb[0].mxu0 %v230
        %v347 = vpop.f32.mrb[0].mxu0
        %v348 = vadd.f32 0.0, %v347
        %v349 = vpop.f32.mrb[0].mxu0
        %350 = vmatprep.mubr.f32.mxu0 0.0
        %351 = vmatmul.mubr.f32.gmra.mrb[0].mxu0 %v233
        %v352 = vpop.f32.mrb[0].mxu0
        %v353 = vadd.f32 0.0, %v352
        %v354 = vpop.f32.mrb[0].mxu0
        %355 = vmatprep.mubr.f32.mxu0 0.0
        %356 = vmatmul.mubr.f32.gmra.mrb[0].mxu0 %v236
        %v357 = vpop.f32.mrb[0].mxu0
        %v358 = vadd.f32 0.0, %v357
        %v359 = vpop.f32.mrb[0].mxu0
        %360 = vmatprep.mubr.f32.mxu0 0.0
        %361 = vmatmul.mubr.f32.gmra.mrb[0].mxu0 %v239
        %v362 = vpop.f32.mrb[0].mxu0
        %v363 = vadd.f32 0.0, %v362
        %v364 = vpop.f32.mrb[0].mxu0
        %365 = vmatprep.mubr.f32.mxu0 0.0
        %366 = vmatmul.mubr.f32.gmra.mrb[0].mxu0 %v242
        %v367 = vpop.f32.mrb[0].mxu0
        %v368 = vadd.f32 0.0, %v367
        %v369 = vpop.f32.mrb[0].mxu0
        %370 = vmatprep.mubr.f32.mxu0 0.0
        %371 = vmatmul.mubr.f32.gmra.mrb[0].mxu0 %v245
        %v372 = vpop.f32.mrb[0].mxu0
        %v373 = vadd.f32 0.0, %v372
        %v374 = vpop.f32.mrb[0].mxu0
        %375 = vmatprep.mubr.f32.mxu0 0.0
        %376 = vmatmul.mubr.f32.gmra.mrb[0].mxu0 %v248
        %v377 = vpop.f32.mrb[0].mxu0
        %v378 = vadd.f32 0.0, %v377
        %v379 = vpop.f32.mrb[0].mxu0
        %380 = vmatprep.mubr.f32.mxu0 0.0
        %381 = vmatmul.mubr.f32.gmra.mrb[0].mxu0 %v251
        %v382 = vpop.f32.mrb[0].mxu0
        %v383 = vadd.f32 0.0, %v382
        %v384 = vpop.f32.mrb[0].mxu0
        %385 = vmatprep.mubr.f32.mxu0 0.0
        %386 = vmatmul.mubr.f32.gmra.mrb[0].mxu0 %v254
        %v387 = vpop.f32.mrb[0].mxu0
        %v388 = vadd.f32 0.0, %v387
        %v389 = vpop.f32.mrb[0].mxu0
        %390 = vmatprep.mubr.f32.mxu0 0.0
        %391 = vmatmul.mubr.f32.gmra.mrb[0].mxu0 %v257
        %v392 = vpop.f32.mrb[0].mxu0
        %v393 = vadd.f32 0.0, %v392
        %v394 = vpop.f32.mrb[0].mxu0
        %395 = vmatprep.mubr.f32.mxu0 0.0
        %396 = vmatmul.mubr.f32.gmra.mrb[0].mxu0 %v260
        %v397 = vpop.f32.mrb[0].mxu0
        %v398 = vadd.f32 0.0, %v397
        %v399 = vpop.f32.mrb[0].mxu0
        %400 = vmatprep.mubr.f32.mxu0 0.0
        %401 = vmatmul.mubr.f32.gmra.mrb[0].mxu0 %v263
        %v402 = vpop.f32.mrb[0].mxu0
        %v403 = vadd.f32 0.0, %v402
        %v404 = vpop.f32.mrb[0].mxu0
        %405 = vmatprep.mubr.f32.mxu0 0.0
        %406 = vmatmul.mubr.f32.gmra.mrb[0].mxu0 %v266
        %v407 = vpop.f32.mrb[0].mxu0
        %v408 = vadd.f32 0.0, %v407
        %v409 = vpop.f32.mrb[0].mxu0
        %410 = vmatprep.mubr.f32.mxu0 0.0
        %411 = vmatmul.mubr.f32.gmra.mrb[0].mxu0 %v269
        %v412 = vpop.f32.mrb[0].mxu0
        %v413 = vadd.f32 0.0, %v412
        %v414 = vpop.f32.mrb[0].mxu0
        %415 = vdwg.mxu0
        %v417 = vsel %vm222, %v187, 0
        %v420 = vsel %vm222, %v188, 0
        %v423 = vsel %vm222, %v189, 0
        %v426 = vsel %vm222, %v190, 0
        %v429 = vsel %vm222, %v191, 0
        %v432 = vsel %vm222, %v192, 0
        %v435 = vsel %vm222, %v193, 0
        %v438 = vsel %vm222, %v194, 0
        %v441 = vsel %vm222, %v195, 0
        %v444 = vsel %vm222, %v196, 0
        %v447 = vsel %vm222, %v197, 0
        %v450 = vsel %vm222, %v198, 0
        %v453 = vsel %vm222, %v199, 0
        %v456 = vsel %vm222, %v200, 0
        %v459 = vsel %vm222, %v201, 0
        %v462 = vsel %vm222, %v202, 0
        %464 = vmatprep.subr.mxu0 0.0
        %465 = vmatpush1.msra.mxu0 %v203
        %466 = vmatprep.subr.mxu0 0.0
        %467 = vmatpush1.msra.mxu0 0.0
        %468 = vmatprep.subr.mxu0 0.0
        %469 = vmatpush1.msra.mxu0 0.0
        %470 = vmatprep.subr.mxu0 0.0
        %471 = vmatpush1.msra.mxu0 0.0
        %472 = vmatprep.subr.mxu0 0.0
        %473 = vmatpush1.msra.mxu0 0.0
        %474 = vmatprep.subr.mxu0 0.0
        %475 = vmatpush1.msra.mxu0 0.0
        %476 = vmatprep.subr.mxu0 0.0
        %477 = vmatpush1.msra.mxu0 0.0
        %478 = vmatprep.subr.mxu0 0.0
        %479 = vmatpush1.msra.mxu0 0.0
        %480 = vmatprep.subr.mxu0 0.0
        %481 = vmatpush1.msra.mxu0 0.0
        %482 = vmatprep.subr.mxu0 0.0
        %483 = vmatpush1.msra.mxu0 0.0
        %484 = vmatprep.subr.mxu0 0.0
        %485 = vmatpush1.msra.mxu0 0.0
        %486 = vmatprep.subr.mxu0 0.0
        %487 = vmatpush1.msra.mxu0 0.0
        %488 = vmatprep.subr.mxu0 0.0
        %489 = vmatpush1.msra.mxu0 0.0
        %490 = vmatprep.subr.mxu0 0.0
        %491 = vmatpush1.msra.mxu0 0.0
        %492 = vmatprep.subr.mxu0 0.0
        %493 = vmatpush1.msra.mxu0 0.0
        %494 = vmatprep.subr.mxu0 0.0
        %495 = vmatpush1.msra.mxu0 0.0
        %496 = vmatprep.subr.mxu0 0.0
        %497 = vmatpush1.msra.mxu0 0.0
        %498 = vmatprep.subr.mxu0 0.0
        %499 = vmatpush1.msra.mxu0 0.0
        %500 = vmatprep.subr.mxu0 0.0
        %501 = vmatpush1.msra.mxu0 0.0
        %502 = vmatprep.subr.mxu0 0.0
        %503 = vmatpush1.msra.mxu0 0.0
        %504 = vmatprep.subr.mxu0 0.0
        %505 = vmatpush1.msra.mxu0 0.0
        %506 = vmatprep.subr.mxu0 0.0
        %507 = vmatpush1.msra.mxu0 0.0
        %508 = vmatprep.subr.mxu0 0.0
        %509 = vmatpush1.msra.mxu0 0.0
        %510 = vmatprep.subr.mxu0 0.0
        %511 = vmatpush1.msra.mxu0 0.0
        %512 = vmatprep.subr.mxu0 0.0
        %513 = vmatpush1.msra.mxu0 0.0
        %514 = vmatprep.subr.mxu0 0.0
        %515 = vmatpush1.msra.mxu0 0.0
        %516 = vmatprep.subr.mxu0 0.0
        %517 = vmatpush1.msra.mxu0 0.0
        %518 = vmatprep.subr.mxu0 0.0
        %519 = vmatpush1.msra.mxu0 0.0
        %520 = vmatprep.subr.mxu0 0.0
        %521 = vmatpush1.msra.mxu0 0.0
        %522 = vmatprep.subr.mxu0 0.0
        %523 = vmatpush1.msra.mxu0 0.0
        %524 = vmatprep.subr.mxu0 0.0
        %525 = vmatpush1.msra.mxu0 0.0
        %526 = vmatprep.subr.mxu0 0.0
        %527 = vmatpush1.msra.mxu0 0.0
        %528 = vmatprep.mubr.f32.mxu0 0.0
        %529 = vmatmul.mubr.f32.gmra.mrb[0].mxu0 %v417
        %v530 = vpop.f32.mrb[0].mxu0
        %v531 = vadd.f32 %v338, %v530
        %v532 = vpop.f32.mrb[0].mxu0
        %533 = vmatprep.mubr.f32.mxu0 0.0
        %534 = vmatmul.mubr.f32.gmra.mrb[0].mxu0 %v420
        %v535 = vpop.f32.mrb[0].mxu0
        %v536 = vadd.f32 %v343, %v535
        %v537 = vpop.f32.mrb[0].mxu0
        %538 = vmatprep.mubr.f32.mxu0 0.0
        %539 = vmatmul.mubr.f32.gmra.mrb[0].mxu0 %v423
        %v540 = vpop.f32.mrb[0].mxu0
        %v541 = vadd.f32 %v348, %v540
        %v542 = vpop.f32.mrb[0].mxu0
        %543 = vmatprep.mubr.f32.mxu0 0.0
        %544 = vmatmul.mubr.f32.gmra.mrb[0].mxu0 %v426
        %v545 = vpop.f32.mrb[0].mxu0
        %v546 = vadd.f32 %v353, %v545
        %v547 = vpop.f32.mrb[0].mxu0
        %548 = vmatprep.mubr.f32.mxu0 0.0
        %549 = vmatmul.mubr.f32.gmra.mrb[0].mxu0 %v429
        %v550 = vpop.f32.mrb[0].mxu0
        %v551 = vadd.f32 %v358, %v550
        %v552 = vpop.f32.mrb[0].mxu0
        %553 = vmatprep.mubr.f32.mxu0 0.0
        %554 = vmatmul.mubr.f32.gmra.mrb[0].mxu0 %v432
        %v555 = vpop.f32.mrb[0].mxu0
        %v556 = vadd.f32 %v363, %v555
        %v557 = vpop.f32.mrb[0].mxu0
        %558 = vmatprep.mubr.f32.mxu0 0.0
        %559 = vmatmul.mubr.f32.gmra.mrb[0].mxu0 %v435
        %v560 = vpop.f32.mrb[0].mxu0
        %v561 = vadd.f32 %v368, %v560
        %v562 = vpop.f32.mrb[0].mxu0
        %563 = vmatprep.mubr.f32.mxu0 0.0
        %564 = vmatmul.mubr.f32.gmra.mrb[0].mxu0 %v438
        %v565 = vpop.f32.mrb[0].mxu0
        %v566 = vadd.f32 %v373, %v565
        %v567 = vpop.f32.mrb[0].mxu0
        %568 = vmatprep.mubr.f32.mxu0 0.0
        %569 = vmatmul.mubr.f32.gmra.mrb[0].mxu0 %v441
        %v570 = vpop.f32.mrb[0].mxu0
        %v571 = vadd.f32 %v378, %v570
        %v572 = vpop.f32.mrb[0].mxu0
        %573 = vmatprep.mubr.f32.mxu0 0.0
        %574 = vmatmul.mubr.f32.gmra.mrb[0].mxu0 %v444
        %v575 = vpop.f32.mrb[0].mxu0
        %v576 = vadd.f32 %v383, %v575
        %v577 = vpop.f32.mrb[0].mxu0
        %578 = vmatprep.mubr.f32.mxu0 0.0
        %579 = vmatmul.mubr.f32.gmra.mrb[0].mxu0 %v447
        %v580 = vpop.f32.mrb[0].mxu0
        %v581 = vadd.f32 %v388, %v580
        %v582 = vpop.f32.mrb[0].mxu0
        %583 = vmatprep.mubr.f32.mxu0 0.0
        %584 = vmatmul.mubr.f32.gmra.mrb[0].mxu0 %v450
        %v585 = vpop.f32.mrb[0].mxu0
        %v586 = vadd.f32 %v393, %v585
        %v587 = vpop.f32.mrb[0].mxu0
        %588 = vmatprep.mubr.f32.mxu0 0.0
        %589 = vmatmul.mubr.f32.gmra.mrb[0].mxu0 %v453
        %v590 = vpop.f32.mrb[0].mxu0
        %v591 = vadd.f32 %v398, %v590
        %v592 = vpop.f32.mrb[0].mxu0
        %593 = vmatprep.mubr.f32.mxu0 0.0
        %594 = vmatmul.mubr.f32.gmra.mrb[0].mxu0 %v456
        %v595 = vpop.f32.mrb[0].mxu0
        %v596 = vadd.f32 %v403, %v595
        %v597 = vpop.f32.mrb[0].mxu0
        %598 = vmatprep.mubr.f32.mxu0 0.0
        %599 = vmatmul.mubr.f32.gmra.mrb[0].mxu0 %v459
        %v600 = vpop.f32.mrb[0].mxu0
        %v601 = vadd.f32 %v408, %v600
        %v602 = vpop.f32.mrb[0].mxu0
        %603 = vmatprep.mubr.f32.mxu0 0.0
        %604 = vmatmul.mubr.f32.gmra.mrb[0].mxu0 %v462
        %v605 = vpop.f32.mrb[0].mxu0
        %v606 = vadd.f32 %v413, %v605
        %v607 = vpop.f32.mrb[0].mxu0
        %608 = vdwg.mxu0
        %s609 = sadd.s32 %s184, 1
        %s610 = smul.u32 %s609, 24
        %s611 = scalar_lea.vmem %s182, %s610
        %v612 = vld [vmem:[%s611] sm:$0xff]
        %v613 = vld [vmem:[%s611 + $0x8] sm:$0xff]
        %v614 = vld [vmem:[%s611 + $0x18] sm:$0xff]
        %v615 = vld [vmem:[%s611 + $0x20] sm:$0xff]
        %v616 = vld [vmem:[%s611 + $0x30] sm:$0xff]
        %v617 = vld [vmem:[%s611 + $0x38] sm:$0xff]
        %v618 = vld [vmem:[%s611 + $0x48] sm:$0xff]
        %v619 = vld [vmem:[%s611 + $0x50] sm:$0xff]
        %v620 = vld [vmem:[%s611 + $0x60] sm:$0xff]
        %v621 = vld [vmem:[%s611 + $0x68] sm:$0xff]
        %v622 = vld [vmem:[%s611 + $0x78] sm:$0xff]
        %v623 = vld [vmem:[%s611 + $0x80] sm:$0xff]
        %v624 = vld [vmem:[%s611 + $0x90] sm:$0xff]
        %v625 = vld [vmem:[%s611 + $0x98] sm:$0xff]
        %v626 = vld [vmem:[%s611 + $0xa8] sm:$0xff]
        %v627 = vld [vmem:[%s611 + $0xb0] sm:$0xff]
        %s628 = scalar_lea.vmem %s1, 16
        %v629 = vld [vmem:[%s628] sm:$0xff]
        %v631 = vsel %vm222, %v612, 0
        %v634 = vsel %vm222, %v613, 0
        %v637 = vsel %vm222, %v614, 0
        %v640 = vsel %vm222, %v615, 0
        %v643 = vsel %vm222, %v616, 0
        %v646 = vsel %vm222, %v617, 0
        %v649 = vsel %vm222, %v618, 0
        %v652 = vsel %vm222, %v619, 0
        %v655 = vsel %vm222, %v620, 0
        %v658 = vsel %vm222, %v621, 0
        %v661 = vsel %vm222, %v622, 0
        %v664 = vsel %vm222, %v623, 0
        %v667 = vsel %vm222, %v624, 0
        %v670 = vsel %vm222, %v625, 0
        %v673 = vsel %vm222, %v626, 0
        %v676 = vsel %vm222, %v627, 0
        %678 = vmatprep.subr.mxu0 0.0
        %679 = vmatpush1.msra.mxu0 %v629
        %680 = vmatprep.subr.mxu0 0.0
        %681 = vmatpush1.msra.mxu0 0.0
        %682 = vmatprep.subr.mxu0 0.0
        %683 = vmatpush1.msra.mxu0 0.0
        %684 = vmatprep.subr.mxu0 0.0
        %685 = vmatpush1.msra.mxu0 0.0
        %686 = vmatprep.subr.mxu0 0.0
        %687 = vmatpush1.msra.mxu0 0.0
        %688 = vmatprep.subr.mxu0 0.0
        %689 = vmatpush1.msra.mxu0 0.0
        %690 = vmatprep.subr.mxu0 0.0
        %691 = vmatpush1.msra.mxu0 0.0
        %692 = vmatprep.subr.mxu0 0.0
        %693 = vmatpush1.msra.mxu0 0.0
        %694 = vmatprep.subr.mxu0 0.0
        %695 = vmatpush1.msra.mxu0 0.0
        %696 = vmatprep.subr.mxu0 0.0
        %697 = vmatpush1.msra.mxu0 0.0
        %698 = vmatprep.subr.mxu0 0.0
        %699 = vmatpush1.msra.mxu0 0.0
        %700 = vmatprep.subr.mxu0 0.0
        %701 = vmatpush1.msra.mxu0 0.0
        %702 = vmatprep.subr.mxu0 0.0
        %703 = vmatpush1.msra.mxu0 0.0
        %704 = vmatprep.subr.mxu0 0.0
        %705 = vmatpush1.msra.mxu0 0.0
        %706 = vmatprep.subr.mxu0 0.0
        %707 = vmatpush1.msra.mxu0 0.0
        %708 = vmatprep.subr.mxu0 0.0
        %709 = vmatpush1.msra.mxu0 0.0
        %710 = vmatprep.subr.mxu0 0.0
        %711 = vmatpush1.msra.mxu0 0.0
        %712 = vmatprep.subr.mxu0 0.0
        %713 = vmatpush1.msra.mxu0 0.0
        %714 = vmatprep.subr.mxu0 0.0
        %715 = vmatpush1.msra.mxu0 0.0
        %716 = vmatprep.subr.mxu0 0.0
        %717 = vmatpush1.msra.mxu0 0.0
        %718 = vmatprep.subr.mxu0 0.0
        %719 = vmatpush1.msra.mxu0 0.0
        %720 = vmatprep.subr.mxu0 0.0
        %721 = vmatpush1.msra.mxu0 0.0
        %722 = vmatprep.subr.mxu0 0.0
        %723 = vmatpush1.msra.mxu0 0.0
        %724 = vmatprep.subr.mxu0 0.0
        %725 = vmatpush1.msra.mxu0 0.0
        %726 = vmatprep.subr.mxu0 0.0
        %727 = vmatpush1.msra.mxu0 0.0
        %728 = vmatprep.subr.mxu0 0.0
        %729 = vmatpush1.msra.mxu0 0.0
        %730 = vmatprep.subr.mxu0 0.0
        %731 = vmatpush1.msra.mxu0 0.0
        %732 = vmatprep.subr.mxu0 0.0
        %733 = vmatpush1.msra.mxu0 0.0
        %734 = vmatprep.subr.mxu0 0.0
        %735 = vmatpush1.msra.mxu0 0.0
        %736 = vmatprep.subr.mxu0 0.0
        %737 = vmatpush1.msra.mxu0 0.0
        %738 = vmatprep.subr.mxu0 0.0
        %739 = vmatpush1.msra.mxu0 0.0
        %740 = vmatprep.subr.mxu0 0.0
        %741 = vmatpush1.msra.mxu0 0.0
        %742 = vmatprep.mubr.f32.mxu0 0.0
        %743 = vmatmul.mubr.f32.gmra.mrb[0].mxu0 %v631
        %v744 = vpop.f32.mrb[0].mxu0
        %v745 = vadd.f32 0.0, %v744
        %v746 = vpop.f32.mrb[0].mxu0
        %747 = vmatprep.mubr.f32.mxu0 0.0
        %748 = vmatmul.mubr.f32.gmra.mrb[0].mxu0 %v634
        %v749 = vpop.f32.mrb[0].mxu0
        %v750 = vadd.f32 0.0, %v749
        %v751 = vpop.f32.mrb[0].mxu0
        %752 = vmatprep.mubr.f32.mxu0 0.0
        %753 = vmatmul.mubr.f32.gmra.mrb[0].mxu0 %v637
        %v754 = vpop.f32.mrb[0].mxu0
        %v755 = vadd.f32 0.0, %v754
        %v756 = vpop.f32.mrb[0].mxu0
        %757 = vmatprep.mubr.f32.mxu0 0.0
        %758 = vmatmul.mubr.f32.gmra.mrb[0].mxu0 %v640
        %v759 = vpop.f32.mrb[0].mxu0
        %v760 = vadd.f32 0.0, %v759
        %v761 = vpop.f32.mrb[0].mxu0
        %762 = vmatprep.mubr.f32.mxu0 0.0
        %763 = vmatmul.mubr.f32.gmra.mrb[0].mxu0 %v643
        %v764 = vpop.f32.mrb[0].mxu0
        %v765 = vadd.f32 0.0, %v764
        %v766 = vpop.f32.mrb[0].mxu0
        %767 = vmatprep.mubr.f32.mxu0 0.0
        %768 = vmatmul.mubr.f32.gmra.mrb[0].mxu0 %v646
        %v769 = vpop.f32.mrb[0].mxu0
        %v770 = vadd.f32 0.0, %v769
        %v771 = vpop.f32.mrb[0].mxu0
        %772 = vmatprep.mubr.f32.mxu0 0.0
        %773 = vmatmul.mubr.f32.gmra.mrb[0].mxu0 %v649
        %v774 = vpop.f32.mrb[0].mxu0
        %v775 = vadd.f32 0.0, %v774
        %v776 = vpop.f32.mrb[0].mxu0
        %777 = vmatprep.mubr.f32.mxu0 0.0
        %778 = vmatmul.mubr.f32.gmra.mrb[0].mxu0 %v652
        %v779 = vpop.f32.mrb[0].mxu0
        %v780 = vadd.f32 0.0, %v779
        %v781 = vpop.f32.mrb[0].mxu0
        %782 = vmatprep.mubr.f32.mxu0 0.0
        %783 = vmatmul.mubr.f32.gmra.mrb[0].mxu0 %v655
        %v784 = vpop.f32.mrb[0].mxu0
        %v785 = vadd.f32 0.0, %v784
        %v786 = vpop.f32.mrb[0].mxu0
        %787 = vmatprep.mubr.f32.mxu0 0.0
        %788 = vmatmul.mubr.f32.gmra.mrb[0].mxu0 %v658
        %v789 = vpop.f32.mrb[0].mxu0
        %v790 = vadd.f32 0.0, %v789
        %v791 = vpop.f32.mrb[0].mxu0
        %792 = vmatprep.mubr.f32.mxu0 0.0
        %793 = vmatmul.mubr.f32.gmra.mrb[0].mxu0 %v661
        %v794 = vpop.f32.mrb[0].mxu0
        %v795 = vadd.f32 0.0, %v794
        %v796 = vpop.f32.mrb[0].mxu0
        %797 = vmatprep.mubr.f32.mxu0 0.0
        %798 = vmatmul.mubr.f32.gmra.mrb[0].mxu0 %v664
        %v799 = vpop.f32.mrb[0].mxu0
        %v800 = vadd.f32 0.0, %v799
        %v801 = vpop.f32.mrb[0].mxu0
        %802 = vmatprep.mubr.f32.mxu0 0.0
        %803 = vmatmul.mubr.f32.gmra.mrb[0].mxu0 %v667
        %v804 = vpop.f32.mrb[0].mxu0
        %v805 = vadd.f32 0.0, %v804
        %v806 = vpop.f32.mrb[0].mxu0
        %807 = vmatprep.mubr.f32.mxu0 0.0
        %808 = vmatmul.mubr.f32.gmra.mrb[0].mxu0 %v670
        %v809 = vpop.f32.mrb[0].mxu0
        %v810 = vadd.f32 0.0, %v809
        %v811 = vpop.f32.mrb[0].mxu0
        %812 = vmatprep.mubr.f32.mxu0 0.0
        %813 = vmatmul.mubr.f32.gmra.mrb[0].mxu0 %v673
        %v814 = vpop.f32.mrb[0].mxu0
        %v815 = vadd.f32 0.0, %v814
        %v816 = vpop.f32.mrb[0].mxu0
        %817 = vmatprep.mubr.f32.mxu0 0.0
        %818 = vmatmul.mubr.f32.gmra.mrb[0].mxu0 %v676
        %v819 = vpop.f32.mrb[0].mxu0
        %v820 = vadd.f32 0.0, %v819
        %v821 = vpop.f32.mrb[0].mxu0
        %822 = vdwg.mxu0
        %v823 = vadd.f32 %v531, %v745
        %v824 = vadd.f32 %v536, %v750
        %v825 = vadd.f32 %v541, %v755
        %v826 = vadd.f32 %v546, %v760
        %v827 = vadd.f32 %v551, %v765
        %v828 = vadd.f32 %v556, %v770
        %v829 = vadd.f32 %v561, %v775
        %v830 = vadd.f32 %v566, %v780
        %v831 = vadd.f32 %v571, %v785
        %v832 = vadd.f32 %v576, %v790
        %v833 = vadd.f32 %v581, %v795
        %v834 = vadd.f32 %v586, %v800
        %v835 = vadd.f32 %v591, %v805
        %v836 = vadd.f32 %v596, %v810
        %v837 = vadd.f32 %v601, %v815
        %v838 = vadd.f32 %v606, %v820
        %v839 = vld [vmem:[%s611 + $0x1] sm:$0xff]
        %v840 = vld [vmem:[%s611 + $0x9] sm:$0xff]
        %v841 = vld [vmem:[%s611 + $0x19] sm:$0xff]
        %v842 = vld [vmem:[%s611 + $0x21] sm:$0xff]
        %v843 = vld [vmem:[%s611 + $0x31] sm:$0xff]
        %v844 = vld [vmem:[%s611 + $0x39] sm:$0xff]
        %v845 = vld [vmem:[%s611 + $0x49] sm:$0xff]
        %v846 = vld [vmem:[%s611 + $0x51] sm:$0xff]
        %v847 = vld [vmem:[%s611 + $0x61] sm:$0xff]
        %v848 = vld [vmem:[%s611 + $0x69] sm:$0xff]
        %v849 = vld [vmem:[%s611 + $0x79] sm:$0xff]
        %v850 = vld [vmem:[%s611 + $0x81] sm:$0xff]
        %v851 = vld [vmem:[%s611 + $0x91] sm:$0xff]
        %v852 = vld [vmem:[%s611 + $0x99] sm:$0xff]
        %v853 = vld [vmem:[%s611 + $0xa9] sm:$0xff]
        %v854 = vld [vmem:[%s611 + $0xb1] sm:$0xff]
        %s855 = scalar_lea.vmem %s1, 24
        %v856 = vld [vmem:[%s855] sm:$0xff]
        %v858 = vsel %vm222, %v839, 0
        %v861 = vsel %vm222, %v840, 0
        %v864 = vsel %vm222, %v841, 0
        %v867 = vsel %vm222, %v842, 0
        %v870 = vsel %vm222, %v843, 0
        %v873 = vsel %vm222, %v844, 0
        %v876 = vsel %vm222, %v845, 0
        %v879 = vsel %vm222, %v846, 0
        %v882 = vsel %vm222, %v847, 0
        %v885 = vsel %vm222, %v848, 0
        %v888 = vsel %vm222, %v849, 0
        %v891 = vsel %vm222, %v850, 0
        %v894 = vsel %vm222, %v851, 0
        %v897 = vsel %vm222, %v852, 0
        %v900 = vsel %vm222, %v853, 0
        %v903 = vsel %vm222, %v854, 0
        %905 = vmatprep.subr.mxu0 0.0
        %906 = vmatpush1.msra.mxu0 %v856
        %907 = vmatprep.subr.mxu0 0.0
        %908 = vmatpush1.msra.mxu0 0.0
        %909 = vmatprep.subr.mxu0 0.0
        %910 = vmatpush1.msra.mxu0 0.0
        %911 = vmatprep.subr.mxu0 0.0
        %912 = vmatpush1.msra.mxu0 0.0
        %913 = vmatprep.subr.mxu0 0.0
        %914 = vmatpush1.msra.mxu0 0.0
        %915 = vmatprep.subr.mxu0 0.0
        %916 = vmatpush1.msra.mxu0 0.0
        %917 = vmatprep.subr.mxu0 0.0
        %918 = vmatpush1.msra.mxu0 0.0
        %919 = vmatprep.subr.mxu0 0.0
        %920 = vmatpush1.msra.mxu0 0.0
        %921 = vmatprep.subr.mxu0 0.0
        %922 = vmatpush1.msra.mxu0 0.0
        %923 = vmatprep.subr.mxu0 0.0
        %924 = vmatpush1.msra.mxu0 0.0
        %925 = vmatprep.subr.mxu0 0.0
        %926 = vmatpush1.msra.mxu0 0.0
        %927 = vmatprep.subr.mxu0 0.0
        %928 = vmatpush1.msra.mxu0 0.0
        %929 = vmatprep.subr.mxu0 0.0
        %930 = vmatpush1.msra.mxu0 0.0
        %931 = vmatprep.subr.mxu0 0.0
        %932 = vmatpush1.msra.mxu0 0.0
        %933 = vmatprep.subr.mxu0 0.0
        %934 = vmatpush1.msra.mxu0 0.0
        %935 = vmatprep.subr.mxu0 0.0
        %936 = vmatpush1.msra.mxu0 0.0
        %937 = vmatprep.subr.mxu0 0.0
        %938 = vmatpush1.msra.mxu0 0.0
        %939 = vmatprep.subr.mxu0 0.0
        %940 = vmatpush1.msra.mxu0 0.0
        %941 = vmatprep.subr.mxu0 0.0
        %942 = vmatpush1.msra.mxu0 0.0
        %943 = vmatprep.subr.mxu0 0.0
        %944 = vmatpush1.msra.mxu0 0.0
        %945 = vmatprep.subr.mxu0 0.0
        %946 = vmatpush1.msra.mxu0 0.0
        %947 = vmatprep.subr.mxu0 0.0
        %948 = vmatpush1.msra.mxu0 0.0
        %949 = vmatprep.subr.mxu0 0.0
        %950 = vmatpush1.msra.mxu0 0.0
        %951 = vmatprep.subr.mxu0 0.0
        %952 = vmatpush1.msra.mxu0 0.0
        %953 = vmatprep.subr.mxu0 0.0
        %954 = vmatpush1.msra.mxu0 0.0
        %955 = vmatprep.subr.mxu0 0.0
        %956 = vmatpush1.msra.mxu0 0.0
        %957 = vmatprep.subr.mxu0 0.0
        %958 = vmatpush1.msra.mxu0 0.0
        %959 = vmatprep.subr.mxu0 0.0
        %960 = vmatpush1.msra.mxu0 0.0
        %961 = vmatprep.subr.mxu0 0.0
        %962 = vmatpush1.msra.mxu0 0.0
        %963 = vmatprep.subr.mxu0 0.0
        %964 = vmatpush1.msra.mxu0 0.0
        %965 = vmatprep.subr.mxu0 0.0
        %966 = vmatpush1.msra.mxu0 0.0
        %967 = vmatprep.subr.mxu0 0.0
        %968 = vmatpush1.msra.mxu0 0.0
        %969 = vmatprep.mubr.f32.mxu0 0.0
        %970 = vmatmul.mubr.f32.gmra.mrb[0].mxu0 %v858
        %v971 = vpop.f32.mrb[0].mxu0
        %v972 = vadd.f32 0.0, %v971
        %v973 = vpop.f32.mrb[0].mxu0
        %974 = vmatprep.mubr.f32.mxu0 0.0
        %975 = vmatmul.mubr.f32.gmra.mrb[0].mxu0 %v861
        %v976 = vpop.f32.mrb[0].mxu0
        %v977 = vadd.f32 0.0, %v976
        %v978 = vpop.f32.mrb[0].mxu0
        %979 = vmatprep.mubr.f32.mxu0 0.0
        %980 = vmatmul.mubr.f32.gmra.mrb[0].mxu0 %v864
        %v981 = vpop.f32.mrb[0].mxu0
        %v982 = vadd.f32 0.0, %v981
        %v983 = vpop.f32.mrb[0].mxu0
        %984 = vmatprep.mubr.f32.mxu0 0.0
        %985 = vmatmul.mubr.f32.gmra.mrb[0].mxu0 %v867
        %v986 = vpop.f32.mrb[0].mxu0
        %v987 = vadd.f32 0.0, %v986
        %v988 = vpop.f32.mrb[0].mxu0
        %989 = vmatprep.mubr.f32.mxu0 0.0
        %990 = vmatmul.mubr.f32.gmra.mrb[0].mxu0 %v870
        %v991 = vpop.f32.mrb[0].mxu0
        %v992 = vadd.f32 0.0, %v991
        %v993 = vpop.f32.mrb[0].mxu0
        %994 = vmatprep.mubr.f32.mxu0 0.0
        %995 = vmatmul.mubr.f32.gmra.mrb[0].mxu0 %v873
        %v996 = vpop.f32.mrb[0].mxu0
        %v997 = vadd.f32 0.0, %v996
        %v998 = vpop.f32.mrb[0].mxu0
        %999 = vmatprep.mubr.f32.mxu0 0.0
        %1000 = vmatmul.mubr.f32.gmra.mrb[0].mxu0 %v876
        %v1001 = vpop.f32.mrb[0].mxu0
        %v1002 = vadd.f32 0.0, %v1001
        %v1003 = vpop.f32.mrb[0].mxu0
        %1004 = vmatprep.mubr.f32.mxu0 0.0
        %1005 = vmatmul.mubr.f32.gmra.mrb[0].mxu0 %v879
        %v1006 = vpop.f32.mrb[0].mxu0
        %v1007 = vadd.f32 0.0, %v1006
        %v1008 = vpop.f32.mrb[0].mxu0
        %1009 = vmatprep.mubr.f32.mxu0 0.0
        %1010 = vmatmul.mubr.f32.gmra.mrb[0].mxu0 %v882
        %v1011 = vpop.f32.mrb[0].mxu0
        %v1012 = vadd.f32 0.0, %v1011
        %v1013 = vpop.f32.mrb[0].mxu0
        %1014 = vmatprep.mubr.f32.mxu0 0.0
        %1015 = vmatmul.mubr.f32.gmra.mrb[0].mxu0 %v885
        %v1016 = vpop.f32.mrb[0].mxu0
        %v1017 = vadd.f32 0.0, %v1016
        %v1018 = vpop.f32.mrb[0].mxu0
        %1019 = vmatprep.mubr.f32.mxu0 0.0
        %1020 = vmatmul.mubr.f32.gmra.mrb[0].mxu0 %v888
        %v1021 = vpop.f32.mrb[0].mxu0
        %v1022 = vadd.f32 0.0, %v1021
        %v1023 = vpop.f32.mrb[0].mxu0
        %1024 = vmatprep.mubr.f32.mxu0 0.0
        %1025 = vmatmul.mubr.f32.gmra.mrb[0].mxu0 %v891
        %v1026 = vpop.f32.mrb[0].mxu0
        %v1027 = vadd.f32 0.0, %v1026
        %v1028 = vpop.f32.mrb[0].mxu0
        %1029 = vmatprep.mubr.f32.mxu0 0.0
        %1030 = vmatmul.mubr.f32.gmra.mrb[0].mxu0 %v894
        %v1031 = vpop.f32.mrb[0].mxu0
        %v1032 = vadd.f32 0.0, %v1031
        %v1033 = vpop.f32.mrb[0].mxu0
        %1034 = vmatprep.mubr.f32.mxu0 0.0
        %1035 = vmatmul.mubr.f32.gmra.mrb[0].mxu0 %v897
        %v1036 = vpop.f32.mrb[0].mxu0
        %v1037 = vadd.f32 0.0, %v1036
        %v1038 = vpop.f32.mrb[0].mxu0
        %1039 = vmatprep.mubr.f32.mxu0 0.0
        %1040 = vmatmul.mubr.f32.gmra.mrb[0].mxu0 %v900
        %v1041 = vpop.f32.mrb[0].mxu0
        %v1042 = vadd.f32 0.0, %v1041
        %v1043 = vpop.f32.mrb[0].mxu0
        %1044 = vmatprep.mubr.f32.mxu0 0.0
        %1045 = vmatmul.mubr.f32.gmra.mrb[0].mxu0 %v903
        %v1046 = vpop.f32.mrb[0].mxu0
        %v1047 = vadd.f32 0.0, %v1046
        %v1048 = vpop.f32.mrb[0].mxu0
        %1049 = vdwg.mxu0
        %v1050 = vadd.f32 %v823, %v972
        %v1051 = vadd.f32 %v824, %v977
        %v1052 = vadd.f32 %v825, %v982
        %v1053 = vadd.f32 %v826, %v987
        %v1054 = vadd.f32 %v827, %v992
        %v1055 = vadd.f32 %v828, %v997
        %v1056 = vadd.f32 %v829, %v1002
        %v1057 = vadd.f32 %v830, %v1007
        %v1058 = vadd.f32 %v831, %v1012
        %v1059 = vadd.f32 %v832, %v1017
        %v1060 = vadd.f32 %v833, %v1022
        %v1061 = vadd.f32 %v834, %v1027
        %v1062 = vadd.f32 %v835, %v1032
        %v1063 = vadd.f32 %v836, %v1037
        %v1064 = vadd.f32 %v837, %v1042
        %v1065 = vadd.f32 %v838, %v1047
        %v1066 = vld [vmem:[%s2] sm:$0x1]
        %v1068 = vlaneseq
        %v1069 = vshrl.u32 %v1068, 7
        %v1070 = vsub.s32 0, %v1069
        %v1071 = vrot.slane %v1066, %v1070
        %v1073 = vadd.f32 %v1050, %v1071
        %v1074 = vadd.f32 %v1051, %v1071
        %v1075 = vadd.f32 %v1052, %v1071
        %v1076 = vadd.f32 %v1053, %v1071
        %v1077 = vadd.f32 %v1054, %v1071
        %v1078 = vadd.f32 %v1055, %v1071
        %v1079 = vadd.f32 %v1056, %v1071
        %v1080 = vadd.f32 %v1057, %v1071
        %v1081 = vadd.f32 %v1058, %v1071
        %v1082 = vadd.f32 %v1059, %v1071
        %v1083 = vadd.f32 %v1060, %v1071
        %v1084 = vadd.f32 %v1061, %v1071
        %v1085 = vadd.f32 %v1062, %v1071
        %v1086 = vadd.f32 %v1063, %v1071
        %v1087 = vadd.f32 %v1064, %v1071
        %v1088 = vadd.f32 %v1065, %v1071
        %1089 = vst [vmem:[%s177] sm:$0xff] %v1073
        %1090 = vst [vmem:[%s177 + $0x8] sm:$0xff] %v1074
        %1091 = vst [vmem:[%s177 + $0x10] sm:$0xff] %v1075
        %1092 = vst [vmem:[%s177 + $0x18] sm:$0xff] %v1076
        %1093 = vst [vmem:[%s177 + $0x20] sm:$0xff] %v1077
        %1094 = vst [vmem:[%s177 + $0x28] sm:$0xff] %v1078
        %1095 = vst [vmem:[%s177 + $0x30] sm:$0xff] %v1079
        %1096 = vst [vmem:[%s177 + $0x38] sm:$0xff] %v1080
        %1097 = vst [vmem:[%s177 + $0x40] sm:$0xff] %v1081
        %1098 = vst [vmem:[%s177 + $0x48] sm:$0xff] %v1082
        %1099 = vst [vmem:[%s177 + $0x50] sm:$0xff] %v1083
        %1100 = vst [vmem:[%s177 + $0x58] sm:$0xff] %v1084
        %1101 = vst [vmem:[%s177 + $0x60] sm:$0xff] %v1085
        %1102 = vst [vmem:[%s177 + $0x68] sm:$0xff] %v1086
        %1103 = vst [vmem:[%s177 + $0x70] sm:$0xff] %v1087
        %1104 = vst [vmem:[%s177 + $0x78] sm:$0xff] %v1088
        %s1105 = sand.u32 %s107, 1
        %s1106 = scalar_lea.sflag [#allocation3], %s1105
        %s1107 = sand.u32 %s107, 1
        %s1108 = smul.addr %s1107, 128
        %s1109 = scalar_lea.vmem [#allocation2], %s1108
        // Predicated region
        $region33: #{tpu_custom_call.1} parent=31 // pred_check
          %p1110 = pneg %p117
        $region34: #{tpu_custom_call.1} parent=31 // pred_check_branch
          %1112 = sbr.rel (%p1110) target = $region36
        $region35: #{tpu_custom_call.1} parent=31 // pred_region
          %s1113 = smul.u32 16, %s22
          %s1115 = ssub.s32 2048, 2048
          %1116 = vsyncadd %s1106, %s1115
          %s1117 = smul.addr %s21, 32
          %s1118 = sadd.s32 %s1113, %s1117
          %s1119 = smul.addr %s1118, 128
          %s1120 = scalar_lea.hbm %s3, %s1119
          %s1121 = sshll.u32 %s1109, 4
          %s1122 = int_to_ptr.vmem [resolvable:$true] %s1121
          %1127 = dma.vmem_to_hbm [thread:$0]  %s1122, 2048, %s1120, %s1106, 128, 128, 8
        $region36: #{tpu_custom_call.1} parent=31 // pred_fallthru
          _
      $region32: #{tpu_custom_call.1} parent=5 // pred_fallthru
        _
      %p1128 = scmp.le.s32.totalorder 2, %s12
      // Predicated region
      $region37: #{tpu_custom_call.1} parent=5 // pred_check
        %p1129 = pneg %p1128
      $region38: #{tpu_custom_call.1} parent=5 // pred_check_branch
        %1131 = sbr.rel (%p1129) target = $region40
      $region39: #{tpu_custom_call.1} parent=5 // pred_region
        %s1132 = ssub.s32 %s12, 2
        // Predicated region
        $region41: #{tpu_custom_call.1} parent=39 // pred_check
          %p1133 = pneg %p123
        $region42: #{tpu_custom_call.1} parent=39 // pred_check_branch
          %1135 = sbr.rel (%p1133) target = $region44
        $region43: #{tpu_custom_call.1} parent=39 // pred_region
          %s1136 = sand.u32 %s108, 1
          %s1137 = scalar_lea.sflag [#allocation3], %s1136
          %s1138 = sand.u32 %s108, 1
          %s1139 = smul.addr %s1138, 128
          %s1140 = scalar_lea.vmem [#allocation2], %s1139
          %1141 = dma.done %s1137, 2048
        $region44: #{tpu_custom_call.1} parent=39 // pred_fallthru
          _
      $region40: #{tpu_custom_call.1} parent=5 // pred_fallthru
        _
    $region6: #{tpu_custom_call.1} parent=1 // loop_footer
      %s16 = sadd.s32 1, %s12
    $region7: #{tpu_custom_call.1} parent=1 // loop_footer_branch
      %11 = sbr.rel target = $region3
    $region8: #{tpu_custom_call.1} parent=1 // loop_exit
      _
    %1142 = vsyncpa [#allocation3], 1
    %s1143 = scalar_lea.sflag [#allocation3], 1
    %1144 = vsyncpa %s1143, 1

</llo_original>
